<compile_context>
chip_gen: v5e
topology: v5e:2x2
jax: 0.10.0
libtpu: 0.0.40
codegen_flags: <defaults>
</compile_context>

<pallas_src>
import functools

import jax
import jax.numpy as jnp
from jax.experimental import pallas as pl
from jax.experimental.pallas import tpu as pltpu

_LN_EPS = 1e-5  # torch.nn.LayerNorm default


# ---------------------------------------------------------------------------
# Helpers: tiling / budgets
# ---------------------------------------------------------------------------
def _round_up(x, m):
    return (x + m - 1) // m * m


def _itemsize(dt):
    return jnp.dtype(dt).itemsize


def _vmem_cap_bytes():
    """Generation-aware VMEM budget with headroom for Mosaic internal scratch."""
    cap = 64 << 20
    try:
        info = pltpu.get_tpu_info()
        cap = int(getattr(info, "vmem_capacity_bytes", cap))
    except Exception:
        pass
    # Leave >=16 MiB free (v7x has only 64 MiB/TC); don't bother above ~100 MiB.
    return max(32 << 20, min(cap - (16 << 20), 100 << 20))


def _vmem_limit(need_bytes, cap):
    return int(min(max(need_bytes + (8 << 20), 16 << 20), cap))


def _pick_row_tile(n, d, itemsize, target_bytes, max_rows):
    """Row tile sized by bytes, 8-aligned, exposing >=2 tiles when possible."""
    n8 = _round_up(max(n, 1), 8)
    tm = _round_up(max(target_bytes // max(d * itemsize, 1), 8), 8)
    tm = min(tm, max_rows, n8)
    # Expose at least 2 row tiles so both v7x TensorCores get work.
    if n8 >= 16 and _round_up(n8, tm) // tm < 2:
        tm = _round_up(pl.cdiv(n8, 2), 8)
    return tm


def _pick_lane_tile(size_128mult, candidates=(512, 256, 128)):
    """Largest preferred 128/256-multiple tile dividing a 128-multiple size."""
    for t in candidates:
        if size_128mult % t == 0:
            return t
    return size_128mult


def _pad_rows(x2d, tile_m):
    n = x2d.shape[0]
    n_pad = _round_up(n, tile_m)
    if n_pad != n:
        x2d = jnp.pad(x2d, ((0, n_pad - n), (0, 0)))
    return x2d, n, n_pad


def _pad_cols(a, target):
    if a.shape[-1] != target:
        a = jnp.pad(a, [(0, 0)] * (a.ndim - 1) + [(0, target - a.shape[-1])])
    return a


# ---------------------------------------------------------------------------
# Kernels
# ---------------------------------------------------------------------------
def _layernorm_kernel(x_ref, gamma_ref, beta_ref, o_ref):
    # x_ref: (TM, D) tile; normalize over the last axis per row, f32 math.
    x = x_ref[...].astype(jnp.float32)
    mean = jnp.mean(x, axis=-1, keepdims=True)
    xc = x - mean
    var = jnp.mean(xc * xc, axis=-1, keepdims=True)   # two-pass, biased (torch)
    inv = jax.lax.rsqrt(var + _LN_EPS)
    y = xc * inv * gamma_ref[...].astype(jnp.float32) + beta_ref[...].astype(jnp.float32)
    o_ref[...] = y.astype(o_ref.dtype)


def _prenorm_linear_kernel(x_ref, gamma_ref, beta_ref, w_ref, b_ref, o_ref):
    # Fused LayerNorm + Linear on one (TM, D) row tile.
    # LayerNorm in f32 (VPU/XLU), matmul in the *native* weight dtype on the
    # MXU (bf16 fast path) with an f32 accumulator.
    x = x_ref[...].astype(jnp.float32)
    mean = jnp.mean(x, axis=-1, keepdims=True)
    xc = x - mean
    var = jnp.mean(xc * xc, axis=-1, keepdims=True)   # two-pass, biased (torch)
    inv = jax.lax.rsqrt(var + _LN_EPS)
    y = xc * inv * gamma_ref[...].astype(jnp.float32) + beta_ref[...].astype(jnp.float32)
    yn = y.astype(w_ref.dtype)                        # native-dtype MXU operands
    acc = jnp.dot(yn, w_ref[...], preferred_element_type=jnp.float32)
    o_ref[...] = (acc + b_ref[...].astype(jnp.float32)).astype(o_ref.dtype)


def _linear_kernel_full_k(x_ref, w_ref, b_ref, o_ref):
    # Single-pass matmul: full reduction fits VMEM, no accumulator scratch.
    acc = jnp.dot(x_ref[...], w_ref[...], preferred_element_type=jnp.float32)
    o_ref[...] = (acc + b_ref[...].astype(jnp.float32)).astype(o_ref.dtype)


def _linear_kernel_ksplit(x_ref, w_ref, b_ref, o_ref, acc_ref):
    # Fallback for very large D: K-accumulated matmul with f32 VMEM scratch.
    k = pl.program_id(2)

    @pl.when(k == 0)
    def _():
        acc_ref[...] = jnp.zeros_like(acc_ref)

    acc_ref[...] += jnp.dot(x_ref[...], w_ref[...],
                            preferred_element_type=jnp.float32)

    @pl.when(k == pl.num_programs(2) - 1)
    def _():
        o_ref[...] = (acc_ref[...] + b_ref[...].astype(jnp.float32)).astype(o_ref.dtype)


# ---------------------------------------------------------------------------
# Wrappers
# ---------------------------------------------------------------------------
def layernorm_pallas(x, gamma, beta):
    """LayerNorm over the last axis of x (any leading dims), row-tiled."""
    lead = x.shape[:-1]
    d = x.shape[-1]
    x2d = x.reshape(-1, d)
    isz = _itemsize(x.dtype)

    # TODO(synk): if d is not a 128-multiple the output takes masked stores;
    # masked-LN padding of the feature axis is not implemented (ViT dims are
    # 128-multiples in practice).
    tm = _pick_row_tile(x2d.shape[0], d, isz, target_bytes=3 << 20, max_rows=2048)
    x2d, n, n_pad = _pad_rows(x2d, tm)

    cap = _vmem_cap_bytes()
    need = 2 * (tm * d * isz) * 2 + 4 * d * isz   # double-buffered x/out + gamma/beta

    out = pl.pallas_call(
        _layernorm_kernel,
        out_shape=jax.ShapeDtypeStruct((n_pad, d), x.dtype),
        grid=(n_pad // tm,),
        in_specs=[
            pl.BlockSpec((tm, d), lambda i: (i, 0)),
            pl.BlockSpec((1, d), lambda i: (0, 0)),
            pl.BlockSpec((1, d), lambda i: (0, 0)),
        ],
        out_specs=pl.BlockSpec((tm, d), lambda i: (i, 0)),
        compiler_params=pltpu.CompilerParams(
            dimension_semantics=("parallel",),
            vmem_limit_bytes=_vmem_limit(need, cap),
        ),
    )(x2d, gamma.reshape(1, d), beta.reshape(1, d))
    return out[:n].reshape(*lead, d)


def linear_pallas(x, w, b):
    """y = x @ w + b over the last axis of x."""
    lead = x.shape[:-1]
    d = x.shape[-1]
    dout = w.shape[1]
    d_p = _round_up(d, 128)
    dout_p = _round_up(dout, 128)

    # Pad lane dims to 128-multiples (zeros are exact for the matmul).
    w2 = _pad_cols(w, dout_p)
    if d_p != d:
        w2 = jnp.pad(w2, ((0, d_p - d), (0, 0)))
    b2 = _pad_cols(b.reshape(1, dout), dout_p)

    x2d = x.reshape(-1, d)
    x2d = _pad_cols(x2d, d_p)

    isz_x = _itemsize(x.dtype)
    isz_w = _itemsize(w.dtype)

    tm = _pick_row_tile(x2d.shape[0], d_p, isz_x, target_bytes=2 << 20, max_rows=512)
    x2d, n, n_pad = _pad_rows(x2d, tm)
    cap = _vmem_cap_bytes()

    def _need_full_k(tn):
        return (2 * tm * d_p * isz_x + 2 * d_p * tn * isz_w
                + 2 * tm * tn * isz_x + 2 * tn * isz_w)

    # Prefer: whole W resident (tn = dout_p, K un-split), else N-tiled with
    # full K, else K-split fallback.
    if _need_full_k(dout_p) <= cap:
        tn = dout_p
    else:
        tn = _pick_lane_tile(dout_p)

    if _need_full_k(tn) <= cap:
        need = _need_full_k(tn)
        out = pl.pallas_call(
            _linear_kernel_full_k,
            out_shape=jax.ShapeDtypeStruct((n_pad, dout_p), x.dtype),
            grid=(dout_p // tn, n_pad // tm),   # W-reuse axis outermost
            in_specs=[
                pl.BlockSpec((tm, d_p), lambda j, i: (i, 0)),
                pl.BlockSpec((d_p, tn), lambda j, i: (0, j)),
                pl.BlockSpec((1, tn), lambda j, i: (0, j)),
            ],
            out_specs=pl.BlockSpec((tm, tn), lambda j, i: (i, j)),
            compiler_params=pltpu.CompilerParams(
                dimension_semantics=("parallel", "parallel"),
                vmem_limit_bytes=_vmem_limit(need, cap),
            ),
        )(x2d, w2, b2)
    else:
        # Large-D fallback: K-split with f32 accumulator.
        tk = _pick_lane_tile(d_p)
        need = (2 * tm * tk * isz_x + 2 * tk * tn * isz_w
                + 2 * tm * tn * isz_x + 2 * tn * isz_w + tm * tn * 4)
        out = pl.pallas_call(
            _linear_kernel_ksplit,
            out_shape=jax.ShapeDtypeStruct((n_pad, dout_p), x.dtype),
            grid=(n_pad // tm, dout_p // tn, d_p // tk),
            in_specs=[
                pl.BlockSpec((tm, tk), lambda i, j, k: (i, k)),
                pl.BlockSpec((tk, tn), lambda i, j, k: (k, j)),
                pl.BlockSpec((1, tn), lambda i, j, k: (0, j)),
            ],
            out_specs=pl.BlockSpec((tm, tn), lambda i, j, k: (i, j)),
            scratch_shapes=[pltpu.VMEM((tm, tn), jnp.float32)],
            compiler_params=pltpu.CompilerParams(
                dimension_semantics=("parallel", "parallel", "arbitrary"),
                vmem_limit_bytes=_vmem_limit(need, cap),
            ),
        )(x2d, w2, b2)

    return out[:n, :dout].reshape(*lead, dout)


def pre_norm(x, gamma, beta, fn, **kwargs):
    """Generic PreNorm.forward: fn(LayerNorm(x), **kwargs).

    Note: this composition round-trips the normalized activations through
    HBM; prefer `pre_norm_linear` when fn is a Linear."""
    return fn(layernorm_pallas(x, gamma, beta), **kwargs)


def pre_norm_linear(x, gamma, beta, w, b, *, w_resident=None, tile_n=None):
    """Fused PreNorm(dim, Linear(dim, dout)) — one kernel, normalized
    activations never touch HBM, W held VMEM-resident when it fits."""
    lead = x.shape[:-1]
    d = x.shape[-1]
    dout = w.shape[1]
    dout_p = _round_up(dout, 128)

    w2 = _pad_cols(w, dout_p)
    b2 = _pad_cols(b.reshape(1, dout), dout_p)
    gamma2 = gamma.reshape(1, d)
    beta2 = beta.reshape(1, d)

    x2d = x.reshape(-1, d)
    isz_x = _itemsize(x.dtype)
    isz_w = _itemsize(w.dtype)

    tm = _pick_row_tile(x2d.shape[0], d, isz_x, target_bytes=2 << 20, max_rows=512)
    x2d, n, n_pad = _pad_rows(x2d, tm)
    cap = _vmem_cap_bytes()

    need_resident = (2 * tm * d * isz_x + 2 * tm * dout_p * isz_x
                     + 2 * d * dout_p * isz_w + 4 * d * isz_x + 2 * dout_p * isz_w)
    if w_resident is None:
        w_resident = need_resident <= cap

    if w_resident:
        # Whole W (D, Dout) lives in VMEM (constant index_map => DMA'd once);
        # grid iterates row tiles only.
        out = pl.pallas_call(
            _prenorm_linear_kernel,
            out_shape=jax.ShapeDtypeStruct((n_pad, dout_p), x.dtype),
            grid=(n_pad // tm,),
            in_specs=[
                pl.BlockSpec((tm, d), lambda i: (i, 0)),
                pl.BlockSpec((1, d), lambda i: (0, 0)),
                pl.BlockSpec((1, d), lambda i: (0, 0)),
                pl.BlockSpec((d, dout_p), lambda i: (0, 0)),   # resident
                pl.BlockSpec((1, dout_p), lambda i: (0, 0)),
            ],
            out_specs=pl.BlockSpec((tm, dout_p), lambda i: (i, 0)),
            compiler_params=pltpu.CompilerParams(
                dimension_semantics=("parallel",),
                vmem_limit_bytes=_vmem_limit(need_resident, cap),
            ),
        )(x2d, gamma2, beta2, w2, b2)
    else:
        # N-tiled fallback: W-reuse (N) axis outermost so each W column tile
        # is streamed from HBM once; LayerNorm is recomputed per tile (cheap
        # VPU work) so both axes stay "parallel" for megacore.
        tn = tile_n if tile_n is not None else _pick_lane_tile(dout_p)
        assert dout_p % tn == 0 and tn % 128 == 0
        need = (2 * tm * d * isz_x + 2 * tm * tn * isz_x
                + 2 * d * tn * isz_w + 4 * d * isz_x + 2 * tn * isz_w)
        out = pl.pallas_call(
            _prenorm_linear_kernel,
            out_shape=jax.ShapeDtypeStruct((n_pad, dout_p), x.dtype),
            grid=(dout_p // tn, n_pad // tm),
            in_specs=[
                pl.BlockSpec((tm, d), lambda j, i: (i, 0)),
                pl.BlockSpec((1, d), lambda j, i: (0, 0)),
                pl.BlockSpec((1, d), lambda j, i: (0, 0)),
                pl.BlockSpec((d, tn), lambda j, i: (0, j)),
                pl.BlockSpec((1, tn), lambda j, i: (0, j)),
            ],
            out_specs=pl.BlockSpec((tm, tn), lambda j, i: (i, j)),
            compiler_params=pltpu.CompilerParams(
                dimension_semantics=("parallel", "parallel"),
                vmem_limit_bytes=_vmem_limit(need, cap),
            ),
        )(x2d, gamma2, beta2, w2, b2)

    return out[:n, :dout].reshape(*lead, dout)


# ---------------------------------------------------------------------------
# Reference (pure JAX) for sanity checking
# ---------------------------------------------------------------------------
def _ref_pre_norm(x, gamma, beta, w, bias):
    mean = jnp.mean(x, axis=-1, keepdims=True)
    var = jnp.mean((x - mean) ** 2, axis=-1, keepdims=True)
    y = (x - mean) / jnp.sqrt(var + _LN_EPS) * gamma + beta
    return jnp.einsum("bsd,de->bse", y, w) + bias


if __name__ == "__main__":
    key = jax.random.PRNGKey(0)
    k_x, k_g, k_bt, k_w, k_b = jax.random.split(key, 5)

    batch, seq, dim, dout = 2, 8, 128, 256

    x = jax.random.normal(k_x, (batch, seq, dim), dtype=jnp.float32)
    gamma = 1.0 + 0.1 * jax.random.normal(k_g, (dim,), dtype=jnp.float32)
    beta = 0.05 * jax.random.normal(k_bt, (dim,), dtype=jnp.float32)
    w = jax.random.normal(k_w, (dim, dout), dtype=jnp.float32) * 0.02
    b = jax.random.normal(k_b, (dout,), dtype=jnp.float32) * 0.02

    ref = _ref_pre_norm(x, gamma, beta, w, b)

    # 1) Fused fast path: W fully VMEM-resident (common ViT case).
    out_a = jax.block_until_ready(pre_norm_linear(x, gamma, beta, w, b))
    assert out_a.shape == (batch, seq, dout)
    assert jnp.allclose(out_a, ref, atol=5e-4, rtol=5e-4)

    # 2) Fused N-tiled fallback (W streamed, N axis outermost, LN recomputed).
    out_b = jax.block_until_ready(
        pre_norm_linear(x, gamma, beta, w, b, w_resident=False, tile_n=128))
    assert jnp.allclose(out_b, ref, atol=5e-4, rtol=5e-4)

    # 3) Generic PreNorm(dim, fn): LayerNorm kernel composed with a Pallas fn.
    fn = functools.partial(linear_pallas, w=w, b=b)
    out_c = jax.block_until_ready(pre_norm(x, gamma, beta, fn))
    assert out_c.shape == (batch, seq, dout)
    assert jnp.allclose(out_c, ref, atol=5e-4, rtol=5e-4)

    # 4) Non-128-multiple dout exercises the upstream padding / slicing path.
    dout_odd = 200
    w_odd = jax.random.normal(k_w, (dim, dout_odd), dtype=jnp.float32) * 0.02
    b_odd = jax.random.normal(k_b, (dout_odd,), dtype=jnp.float32) * 0.02
    ref_odd = _ref_pre_norm(x, gamma, beta, w_odd, b_odd)
    out_d = jax.block_until_ready(pre_norm_linear(x, gamma, beta, w_odd, b_odd))
    assert out_d.shape == (batch, seq, dout_odd)
    assert jnp.allclose(out_d, ref_odd, atol=5e-4, rtol=5e-4)

    # 5) bf16 inputs: LN math in f32, matmul on the native-dtype MXU path.
    xb = x.astype(jnp.bfloat16)
    gb = gamma.astype(jnp.bfloat16)
    btb = beta.astype(jnp.bfloat16)
    wb = w.astype(jnp.bfloat16)
    bb = b.astype(jnp.bfloat16)
    ref_bf = _ref_pre_norm(xb.astype(jnp.float32), gb.astype(jnp.float32),
                           btb.astype(jnp.float32), wb.astype(jnp.float32),
                           bb.astype(jnp.float32))
    out_e = jax.block_until_ready(pre_norm_linear(xb, gb, btb, wb, bb))
    assert jnp.allclose(out_e.astype(jnp.float32), ref_bf, atol=5e-2, rtol=5e-2)

    print("KERNEL_OK")
</pallas_src>

<mosaic_0001>
module attributes {stable_mosaic.version = 11 : i64} {
  func.func @_prenorm_linear_kernel(%arg0: i32, %arg1: memref<8x128xf32, #tpu.memory_space<vmem>>, %arg2: memref<1x128xf32, #tpu.memory_space<vmem>>, %arg3: memref<1x128xf32, #tpu.memory_space<vmem>>, %arg4: memref<128x256xf32, #tpu.memory_space<vmem>>, %arg5: memref<1x256xf32, #tpu.memory_space<vmem>>, %arg6: memref<8x256xf32, #tpu.memory_space<vmem>>) attributes {dimension_semantics = [#tpu.dimension_semantics<parallel>], iteration_bounds = array<i64: 2>, scalar_prefetch = 0 : i64, scratch_operands = 0 : i64, tpu.core_type = #tpu.core_type<tc>, window_params = [{transform_indices = @transform_0, window_bounds = array<i64: 8, 128>}, {pipeline_mode = #tpu.pipeline_mode<synchronous>, transform_indices = @transform_1, window_bounds = array<i64: 1, 128>}, {pipeline_mode = #tpu.pipeline_mode<synchronous>, transform_indices = @transform_2, window_bounds = array<i64: 1, 128>}, {pipeline_mode = #tpu.pipeline_mode<synchronous>, transform_indices = @transform_3, window_bounds = array<i64: 128, 256>}, {pipeline_mode = #tpu.pipeline_mode<synchronous>, transform_indices = @transform_4, window_bounds = array<i64: 1, 256>}, {transform_indices = @transform_5, window_bounds = array<i64: 8, 256>}]} {
    %c0 = arith.constant 0 : index
    %c0_0 = arith.constant 0 : index
    %0 = vector.load %arg1[%c0, %c0_0] : memref<8x128xf32, #tpu.memory_space<vmem>>, vector<8x128xf32>
    %cst = arith.constant dense<0.000000e+00> : vector<8xf32>
    %1 = vector.multi_reduction <add>, %0, %cst [1] : vector<8x128xf32> to vector<8xf32>
    %2 = vector.shape_cast %1 : vector<8xf32> to vector<8x1xf32>
    %cst_1 = arith.constant 1.280000e+02 : f32
    %3 = vector.broadcast %cst_1 : f32 to vector<8x1xf32>
    %4 = arith.divf %2, %3 : vector<8x1xf32>
    %5 = vector.broadcast %4 : vector<8x1xf32> to vector<8x128xf32>
    %6 = arith.subf %0, %5 : vector<8x128xf32>
    %7 = arith.mulf %6, %6 : vector<8x128xf32>
    %cst_2 = arith.constant dense<0.000000e+00> : vector<8xf32>
    %8 = vector.multi_reduction <add>, %7, %cst_2 [1] : vector<8x128xf32> to vector<8xf32>
    %9 = vector.shape_cast %8 : vector<8xf32> to vector<8x1xf32>
    %cst_3 = arith.constant 1.280000e+02 : f32
    %10 = vector.broadcast %cst_3 : f32 to vector<8x1xf32>
    %11 = arith.divf %9, %10 : vector<8x1xf32>
    %cst_4 = arith.constant 9.99999974E-6 : f32
    %12 = vector.broadcast %cst_4 : f32 to vector<8x1xf32>
    %13 = arith.addf %11, %12 : vector<8x1xf32>
    %14 = math.rsqrt %13 : vector<8x1xf32>
    %15 = vector.broadcast %14 : vector<8x1xf32> to vector<8x128xf32>
    %16 = arith.mulf %6, %15 : vector<8x128xf32>
    %c0_5 = arith.constant 0 : index
    %c0_6 = arith.constant 0 : index
    %17 = vector.load %arg2[%c0_5, %c0_6] : memref<1x128xf32, #tpu.memory_space<vmem>>, vector<1x128xf32>
    %18 = vector.broadcast %17 : vector<1x128xf32> to vector<8x128xf32>
    %19 = arith.mulf %16, %18 : vector<8x128xf32>
    %c0_7 = arith.constant 0 : index
    %c0_8 = arith.constant 0 : index
    %20 = vector.load %arg3[%c0_7, %c0_8] : memref<1x128xf32, #tpu.memory_space<vmem>>, vector<1x128xf32>
    %21 = vector.broadcast %20 : vector<1x128xf32> to vector<8x128xf32>
    %22 = arith.addf %19, %21 : vector<8x128xf32>
    %c0_9 = arith.constant 0 : index
    %c0_10 = arith.constant 0 : index
    %23 = vector.load %arg4[%c0_9, %c0_10] : memref<128x256xf32, #tpu.memory_space<vmem>>, vector<128x256xf32>
    %cst_11 = arith.constant dense<0.000000e+00> : vector<8x256xf32>
    %24 = tpu.matmul %22, %23, %cst_11 {dimension_numbers = #tpu.dot_dimension_numbers<[1], [0], [0], [1], [0, 0, 1, 1], [], []>} : vector<8x128xf32>, vector<128x256xf32>, vector<8x256xf32> -> vector<8x256xf32>
    %c0_12 = arith.constant 0 : index
    %c0_13 = arith.constant 0 : index
    %25 = vector.load %arg5[%c0_12, %c0_13] : memref<1x256xf32, #tpu.memory_space<vmem>>, vector<1x256xf32>
    %26 = vector.broadcast %25 : vector<1x256xf32> to vector<8x256xf32>
    %27 = arith.addf %24, %26 : vector<8x256xf32>
    %c0_14 = arith.constant 0 : index
    %c0_15 = arith.constant 0 : index
    %28 = vector.load %arg6[%c0_14, %c0_15] : memref<8x256xf32, #tpu.memory_space<vmem>>, vector<8x256xf32>
    tpu.vector_store %arg6[%c0_14, %c0_15], %27 {strides = array<i32>} : memref<8x256xf32, #tpu.memory_space<vmem>>, vector<8x256xf32>,
    return
  }
  func.func @transform_0(%arg0: i32) -> (i32, i32) {
    %c0_i32 = arith.constant 0 : i32
    %c0_i32_0 = arith.constant 0 : i32
    return %arg0, %c0_i32 : i32, i32
  }
  func.func @transform_1(%arg0: i32) -> (i32, i32) {
    %c0_i32 = arith.constant 0 : i32
    %c0_i32_0 = arith.constant 0 : i32
    %c0_i32_1 = arith.constant 0 : i32
    return %c0_i32, %c0_i32_0 : i32, i32
  }
  func.func @transform_2(%arg0: i32) -> (i32, i32) {
    %c0_i32 = arith.constant 0 : i32
    %c0_i32_0 = arith.constant 0 : i32
    %c0_i32_1 = arith.constant 0 : i32
    return %c0_i32, %c0_i32_0 : i32, i32
  }
  func.func @transform_3(%arg0: i32) -> (i32, i32) {
    %c0_i32 = arith.constant 0 : i32
    %c0_i32_0 = arith.constant 0 : i32
    %c0_i32_1 = arith.constant 0 : i32
    return %c0_i32, %c0_i32_0 : i32, i32
  }
  func.func @transform_4(%arg0: i32) -> (i32, i32) {
    %c0_i32 = arith.constant 0 : i32
    %c0_i32_0 = arith.constant 0 : i32
    %c0_i32_1 = arith.constant 0 : i32
    return %c0_i32, %c0_i32_0 : i32, i32
  }
  func.func @transform_5(%arg0: i32) -> (i32, i32) {
    %c0_i32 = arith.constant 0 : i32
    %c0_i32_0 = arith.constant 0 : i32
    return %arg0, %c0_i32 : i32, i32
  }
}

</mosaic_0001>

<llo_original>
// kernel: tpu_custom_call.1
$region0: #{tpu_custom_call.1}
  #allocation0 [shape = 'u32[]', space=smem, size = 0x4, offset = 0x4, fixed_abs, tag = 'smem constant byte address 0x4 - core index']
  #allocation1 [shape = 'u32[72,128]{1,0:T(1,128)}', space=vmem, size = 0x9000, scoped, tag = 'internal scratch']
  %s0 = inlined_call_operand.hbm [shape: f32[16,128], index: 0, kind: input, shape index: {}]
  %s1 = inlined_call_operand.hbm [shape: f32[1,128], index: 1, kind: input, shape index: {}]
  %s2 = inlined_call_operand.vmem [shape: f32[1,128], index: 2, kind: input, shape index: {}]
  %s3 = inlined_call_operand.hbm [shape: f32[128,256], index: 3, kind: input, shape index: {}]
  %s4 = inlined_call_operand.vmem [shape: f32[1,256], index: 4, kind: input, shape index: {}]
  %s5 = inlined_call_operand.hbm [shape: f32[16,256], index: 5, kind: output, shape index: {}]
  %s6 = sld [smem:[#allocation0]]
  $region65: #{tpu_custom_call.1} parent=0
    _
  %s8 = ssub.s32 1, %s6
  %s9 = scalar_select 0, %s8, %s6
  $region1: #{tpu_custom_call.1} parent=0
    #allocation2 [shape = 'u8[8192]{0}', space=vmem, size = 0x2000, scoped, tag = 'input window, operand 0']
    #allocation3 [shape = 's32[2]{0}', space=sflag, size = 0x8, scoped, tag = 'scoped memory for tpu_custom_call.1']
    #allocation4 [shape = 's32[2]{0}', space=sflag, size = 0x8, scoped, tag = 'scoped memory for tpu_custom_call.1']
    #allocation5 [shape = 'u8[512]{0}', space=vmem, size = 0x400, scoped, tag = 'input window, operand 1, single buffered']
    #allocation6 [shape = 's32[1]{0}', space=sflag, size = 0x4, scoped, tag = 'scoped memory for tpu_custom_call.1']
    #allocation7 [shape = 'u8[131072]{0}', space=vmem, size = 0x20000, scoped, tag = 'input window, operand 3, single buffered']
    #allocation8 [shape = 'u8[16384]{0}', space=vmem, size = 0x4000, scoped, tag = 'output window, operand 0']
    %10 = vsyncpa [#allocation3], 0
    %s11 = scalar_lea.sflag [#allocation3], 1
    %12 = vsyncpa %s11, 0
    %13 = vsyncpa [#allocation6], 0
    %14 = vsyncpa [#allocation4], 0
    %s15 = scalar_lea.sflag [#allocation4], 1
    %16 = vsyncpa %s15, 0
    loop: start=0, step=1, limit=4
    $region2: #{tpu_custom_call.1} parent=1 // loop_pre_header
      _
    $region3: #{tpu_custom_call.1} parent=1 // loop_header
      %s18 = sphi 0, %s22
      %p19 = scmp.ge.s32.totalorder %s18, 4
      %s28 = sphi 0, %s30
      %s31 = sphi 0, %s28
      %s32 = sphi 0, %s31
      %s48 = sphi 0, %s32
      %s52 = sphi 0, %s52
      %s54 = sphi 0, %s52
      %s55 = sphi 0, %s54
      %s69 = sphi 0, %s55
      %s73 = sphi 0, %s73
      %s75 = sphi 0, %s73
      %s76 = sphi 0, %s75
      %s90 = sphi 0, %s76
      %s94 = sphi 0, %s94
      %s96 = sphi 0, %s94
      %s97 = sphi 0, %s96
      %s111 = sphi 0, %s97
      %s115 = sphi 0, %s115
      %s117 = sphi 0, %s115
      %s118 = sphi 0, %s117
      %s132 = sphi 0, %s118
      %s138 = sphi 0, %s140
      %s141 = sphi 0, %s138
      %s142 = sphi 0, %s141
      %s158 = sphi 0, %s142
    $region4: #{tpu_custom_call.1} parent=1 // loop_header_branch
      %21 = sbr.rel (%p19) target = $region8
    $region5: #{tpu_custom_call.1} parent=1 // loop_body
      %s23 = ssub.s32 %s18, 1
      %s24 = ssub.s32 %s18, 2
      %s25 = sadd.s32 %s18, 1
      %s26 = ssub.s32 %s18, %s25
      %p27 = scmp.eq.s32.totalorder %s26, 0
      %s29 = sadd.s32 %s28, 1
      %s30 = scalar_select %p27, %s28, %s29
      %p33 = pneg %p27
      %p34 = scmp.eq.s32.totalorder %s18, 1
      %p35 = por %p33, %p34
      %p36 = scmp.ne.s32.totalorder %s28, %s31
      %p37 = scmp.eq.s32.totalorder %s18, 0
      %p38 = por %p36, %p37
      %p39 = scmp.ne.s32.totalorder %s28, %s31
      %p40 = scmp.eq.s32.totalorder %s23, 1
      %p41 = por %p39, %p40
      %p42 = scmp.ne.s32.totalorder %s31, %s32
      %p43 = scmp.eq.s32.totalorder %s23, 0
      %p44 = por %p42, %p43
      %p45 = scmp.ne.s32.totalorder %s31, %s32
      %p46 = scmp.eq.s32.totalorder %s24, 1
      %p47 = por %p45, %p46
      %p49 = scmp.ne.s32.totalorder %s32, %s48
      %p50 = scmp.eq.s32.totalorder %s24, 0
      %p51 = por %p49, %p50
      %s53 = sadd.s32 %s52, 1
      %p56 = scmp.eq.s32.totalorder %s18, 1
      %p57 = scmp.ne.s32.totalorder %s52, %s54
      %p58 = scmp.eq.s32.totalorder %s18, 0
      %p59 = por %p57, %p58
      %p60 = scmp.ne.s32.totalorder %s52, %s54
      %p61 = scmp.eq.s32.totalorder %s23, 1
      %p62 = por %p60, %p61
      %p63 = scmp.ne.s32.totalorder %s54, %s55
      %p64 = scmp.eq.s32.totalorder %s23, 0
      %p65 = por %p63, %p64
      %p66 = scmp.ne.s32.totalorder %s54, %s55
      %p67 = scmp.eq.s32.totalorder %s24, 1
      %p68 = por %p66, %p67
      %p70 = scmp.ne.s32.totalorder %s55, %s69
      %p71 = scmp.eq.s32.totalorder %s24, 0
      %p72 = por %p70, %p71
      %s74 = sadd.s32 %s73, 1
      %p77 = scmp.eq.s32.totalorder %s18, 1
      %p78 = scmp.ne.s32.totalorder %s73, %s75
      %p79 = scmp.eq.s32.totalorder %s18, 0
      %p80 = por %p78, %p79
      %p81 = scmp.ne.s32.totalorder %s73, %s75
      %p82 = scmp.eq.s32.totalorder %s23, 1
      %p83 = por %p81, %p82
      %p84 = scmp.ne.s32.totalorder %s75, %s76
      %p85 = scmp.eq.s32.totalorder %s23, 0
      %p86 = por %p84, %p85
      %p87 = scmp.ne.s32.totalorder %s75, %s76
      %p88 = scmp.eq.s32.totalorder %s24, 1
      %p89 = por %p87, %p88
      %p91 = scmp.ne.s32.totalorder %s76, %s90
      %p92 = scmp.eq.s32.totalorder %s24, 0
      %p93 = por %p91, %p92
      %s95 = sadd.s32 %s94, 1
      %p98 = scmp.eq.s32.totalorder %s18, 1
      %p99 = scmp.ne.s32.totalorder %s94, %s96
      %p100 = scmp.eq.s32.totalorder %s18, 0
      %p101 = por %p99, %p100
      %p102 = scmp.ne.s32.totalorder %s94, %s96
      %p103 = scmp.eq.s32.totalorder %s23, 1
      %p104 = por %p102, %p103
      %p105 = scmp.ne.s32.totalorder %s96, %s97
      %p106 = scmp.eq.s32.totalorder %s23, 0
      %p107 = por %p105, %p106
      %p108 = scmp.ne.s32.totalorder %s96, %s97
      %p109 = scmp.eq.s32.totalorder %s24, 1
      %p110 = por %p108, %p109
      %p112 = scmp.ne.s32.totalorder %s97, %s111
      %p113 = scmp.eq.s32.totalorder %s24, 0
      %p114 = por %p112, %p113
      %s116 = sadd.s32 %s115, 1
      %p119 = scmp.eq.s32.totalorder %s18, 1
      %p120 = scmp.ne.s32.totalorder %s115, %s117
      %p121 = scmp.eq.s32.totalorder %s18, 0
      %p122 = por %p120, %p121
      %p123 = scmp.ne.s32.totalorder %s115, %s117
      %p124 = scmp.eq.s32.totalorder %s23, 1
      %p125 = por %p123, %p124
      %p126 = scmp.ne.s32.totalorder %s117, %s118
      %p127 = scmp.eq.s32.totalorder %s23, 0
      %p128 = por %p126, %p127
      %p129 = scmp.ne.s32.totalorder %s117, %s118
      %p130 = scmp.eq.s32.totalorder %s24, 1
      %p131 = por %p129, %p130
      %p133 = scmp.ne.s32.totalorder %s118, %s132
      %p134 = scmp.eq.s32.totalorder %s24, 0
      %p135 = por %p133, %p134
      %s136 = ssub.s32 %s18, %s25
      %p137 = scmp.eq.s32.totalorder %s136, 0
      %s139 = sadd.s32 %s138, 1
      %s140 = scalar_select %p137, %s138, %s139
      %p143 = pneg %p137
      %p144 = scmp.eq.s32.totalorder %s18, 1
      %p145 = por %p143, %p144
      %p146 = scmp.ne.s32.totalorder %s138, %s141
      %p147 = scmp.eq.s32.totalorder %s18, 0
      %p148 = por %p146, %p147
      %p149 = scmp.ne.s32.totalorder %s138, %s141
      %p150 = scmp.eq.s32.totalorder %s23, 1
      %p151 = por %p149, %p150
      %p152 = scmp.ne.s32.totalorder %s141, %s142
      %p153 = scmp.eq.s32.totalorder %s23, 0
      %p154 = por %p152, %p153
      %p155 = scmp.ne.s32.totalorder %s141, %s142
      %p156 = scmp.eq.s32.totalorder %s24, 1
      %p157 = por %p155, %p156
      %p159 = scmp.ne.s32.totalorder %s142, %s158
      %p160 = scmp.eq.s32.totalorder %s24, 0
      %p161 = por %p159, %p160
      %p162 = scmp.le.s32.totalorder 1, %s18
      %p163 = scmp.lt.s32.totalorder %s18, 3
      %p164 = pnand %p162, %p163
      %p165 = pneg %p164
      // Predicated region
      $region9: #{tpu_custom_call.1} parent=5 // pred_check
        _
      $region10: #{tpu_custom_call.1} parent=5 // pred_check_branch
        %167 = sbr.rel (%p164) target = $region12
      $region11: #{tpu_custom_call.1} parent=5 // pred_region
        %s168 = ssub.s32 %s18, 1
        // Predicated region
        $region13: #{tpu_custom_call.1} parent=11 // pred_check
          %p169 = pneg %p65
        $region14: #{tpu_custom_call.1} parent=11 // pred_check_branch
          %171 = sbr.rel (%p169) target = $region16
        $region15: #{tpu_custom_call.1} parent=11 // pred_region
          %173 = vsyncadd [#allocation6], 0
          %s175 = sshll.u32 %s1, 4
          %s176 = int_to_ptr.hbm [resolvable:$true] %s175
          %s177 = sshll.u32 [#allocation5], 4
          %s178 = int_to_ptr.vmem [resolvable:$true] %s177
          %180 = dma.hbm_to_vmem [thread:$0]  %s176, 16, %s178, [#allocation6]
        $region16: #{tpu_custom_call.1} parent=11 // pred_fallthru
          _
        // Predicated region
        $region17: #{tpu_custom_call.1} parent=11 // pred_check
          %p181 = pneg %p86
        $region18: #{tpu_custom_call.1} parent=11 // pred_check_branch
          %183 = sbr.rel (%p181) target = $region20
        $region19: #{tpu_custom_call.1} parent=11 // pred_region
          _
        $region20: #{tpu_custom_call.1} parent=11 // pred_fallthru
          _
        // Predicated region
        $region21: #{tpu_custom_call.1} parent=11 // pred_check
          %p184 = pneg %p107
        $region22: #{tpu_custom_call.1} parent=11 // pred_check_branch
          %186 = sbr.rel (%p184) target = $region24
        $region23: #{tpu_custom_call.1} parent=11 // pred_region
          %188 = vsyncadd [#allocation6], 0
          %s189 = sshll.u32 %s3, 4
          %s190 = int_to_ptr.hbm [resolvable:$true] %s189
          %s191 = sshll.u32 [#allocation7], 4
          %s192 = int_to_ptr.vmem [resolvable:$true] %s191
          %197 = dma.hbm_to_vmem [thread:$0]  %s190, 4096, %s192, [#allocation6], 256, 256, 16
        $region24: #{tpu_custom_call.1} parent=11 // pred_fallthru
          _
        // Predicated region
        $region25: #{tpu_custom_call.1} parent=11 // pred_check
          %p198 = pneg %p128
        $region26: #{tpu_custom_call.1} parent=11 // pred_check_branch
          %200 = sbr.rel (%p198) target = $region28
        $region27: #{tpu_custom_call.1} parent=11 // pred_region
          _
        $region28: #{tpu_custom_call.1} parent=11 // pred_fallthru
          _
      $region12: #{tpu_custom_call.1} parent=5 // pred_fallthru
        _
      %p201 = scmp.lt.s32.totalorder %s18, 2
      // Predicated region
      $region29: #{tpu_custom_call.1} parent=5 // pred_check
        %p202 = pneg %p201
      $region30: #{tpu_custom_call.1} parent=5 // pred_check_branch
        %204 = sbr.rel (%p202) target = $region32
      $region31: #{tpu_custom_call.1} parent=5 // pred_region
        // Predicated region
        $region33: #{tpu_custom_call.1} parent=31 // pred_check
          %p205 = pneg %p38
        $region34: #{tpu_custom_call.1} parent=31 // pred_check_branch
          %207 = sbr.rel (%p205) target = $region36
        $region35: #{tpu_custom_call.1} parent=31 // pred_region
          %s208 = sand.u32 %s28, 1
          %s209 = scalar_lea.sflag [#allocation3], %s208
          %s210 = sand.u32 %s28, 1
          %s211 = smul.addr %s210, 8
          %s212 = scalar_lea.vmem [#allocation2], %s211
          %214 = vsyncadd %s209, 0
          %s215 = smul.addr %s18, 8
          %s216 = scalar_lea.hbm %s0, %s215
          %s218 = sshll.u32 %s216, 4
          %s219 = int_to_ptr.hbm [resolvable:$true] %s218
          %s220 = sshll.u32 %s212, 4
          %s221 = int_to_ptr.vmem [resolvable:$true] %s220
          %223 = dma.hbm_to_vmem [thread:$0]  %s219, 128, %s221, %s209
        $region36: #{tpu_custom_call.1} parent=31 // pred_fallthru
          _
      $region32: #{tpu_custom_call.1} parent=5 // pred_fallthru
        _
      %p224 = scmp.le.s32.totalorder 1, %s18
      %p225 = scmp.lt.s32.totalorder %s18, 3
      %p226 = pnand %p224, %p225
      %p227 = pneg %p226
      // Predicated region
      $region37: #{tpu_custom_call.1} parent=5 // pred_check
        _
      $region38: #{tpu_custom_call.1} parent=5 // pred_check_branch
        %229 = sbr.rel (%p226) target = $region40
      $region39: #{tpu_custom_call.1} parent=5 // pred_region
        %s230 = ssub.s32 %s18, 1
        %s231 = sand.u32 %s31, 1
        %s232 = scalar_lea.sflag [#allocation3], %s231
        %s233 = sand.u32 %s31, 1
        %s234 = smul.addr %s233, 8
        %s235 = scalar_lea.vmem [#allocation2], %s234
        // Predicated region
        $region41: #{tpu_custom_call.1} parent=39 // pred_check
          %p236 = pneg %p44
        $region42: #{tpu_custom_call.1} parent=39 // pred_check_branch
          %238 = sbr.rel (%p236) target = $region44
        $region43: #{tpu_custom_call.1} parent=39 // pred_region
          %240 = dma.done %s232, 128
        $region44: #{tpu_custom_call.1} parent=39 // pred_fallthru
          _
        // Predicated region
        $region45: #{tpu_custom_call.1} parent=39 // pred_check
          %p241 = pneg %p65
        $region46: #{tpu_custom_call.1} parent=39 // pred_check_branch
          %243 = sbr.rel (%p241) target = $region48
        $region47: #{tpu_custom_call.1} parent=39 // pred_region
          %245 = dma.done [#allocation6], 16
        $region48: #{tpu_custom_call.1} parent=39 // pred_fallthru
          _
        // Predicated region
        $region49: #{tpu_custom_call.1} parent=39 // pred_check
          %p246 = pneg %p107
        $region50: #{tpu_custom_call.1} parent=39 // pred_check_branch
          %248 = sbr.rel (%p246) target = $region52
        $region51: #{tpu_custom_call.1} parent=39 // pred_region
          %250 = dma.done [#allocation6], 4096
        $region52: #{tpu_custom_call.1} parent=39 // pred_fallthru
          _
        %s251 = sand.u32 %s31, 1
        %s252 = scalar_lea.sflag [#allocation3], %s251
        %s253 = sand.u32 %s31, 1
        %s254 = smul.addr %s253, 8
        %s255 = scalar_lea.vmem [#allocation2], %s254
        %p256 = pneg %p44
        %p257 = pneg %p41
        %p258 = pneg %p65
        %p259 = pneg %p62
        %p260 = pneg %p86
        %p261 = pneg %p83
        %p262 = pneg %p107
        %p263 = pneg %p104
        %p264 = pneg %p128
        %p265 = pneg %p125
        %p266 = pneg %p154
        %p267 = pneg %p151
        %s268 = sand.u32 %s141, 1
        %s269 = scalar_lea.sflag [#allocation4], %s268
        %s270 = sand.u32 %s141, 1
        %s271 = smul.addr %s270, 16
        %s272 = scalar_lea.vmem [#allocation8], %s271
        %v273 = vld [vmem:[%s235] sm:$0xff]
        %274 = vadd.xlane.f32.xlu0 %v273
        %v275 = vpop.xlane.xlu0 %274
        %v276 = vrcp.pop 128.0
        %v277 = vmul.f32 128.0, %v276
        %v278 = vsub.f32 1.0, %v277
        %v279 = vmul.f32 %v276, %v278
        %v280 = vadd.f32 %v276, %v279
        %vm281 = vweird.f32 %v276
        %v282 = vsel %vm281, %v276, %v280
        %v283 = vmul.f32 %v275, %v282
        %v284 = vsub.f32 %v273, %v283
        %v285 = vmul.f32 %v284, %v284
        %286 = vadd.xlane.f32.xlu0 %v285
        %v287 = vpop.xlane.xlu0 %286
        %v288 = vmul.f32 %v287, %v282
        %v289 = vadd.f32 %v288, 1e-05
        %v290 = vrsqrt.pop %v289
        %v291 = vmul.f32 %v290, %v289
        %v292 = vmul.f32 %v291, %v290
        %v293 = vmul.f32 0.5, %v292
        %v294 = vsub.f32 1.5, %v293
        %v295 = vmul.f32 %v290, %v294
        %vm296 = vweird.f32 %v289
        %vm297 = vweird.f32 %v290
        %vm298 = vmor %vm296, %vm297
        %v299 = vsel %vm298, %v290, %v295
        %v300 = vmul.f32 %v284, %v299
        %v301 = vld [vmem:[#allocation5] sm:$0x1]
        %v303 = vperm.slane %v301, 0
        %v305 = vmul.f32 %v300, %v303
        %v306 = vld [vmem:[%s2] sm:$0x1]
        %v308 = vperm.slane %v306, 0
        %v310 = vadd.f32 %v305, %v308
        %v311 = vld [vmem:[#allocation7] sm:$0xff]
        %v312 = vld [vmem:[#allocation7 + $0x8] sm:$0xff]
        %v313 = vld [vmem:[#allocation7 + $0x10] sm:$0xff]
        %v314 = vld [vmem:[#allocation7 + $0x18] sm:$0xff]
        %v315 = vld [vmem:[#allocation7 + $0x20] sm:$0xff]
        %v316 = vld [vmem:[#allocation7 + $0x28] sm:$0xff]
        %v317 = vld [vmem:[#allocation7 + $0x30] sm:$0xff]
        %v318 = vld [vmem:[#allocation7 + $0x38] sm:$0xff]
        %v319 = vld [vmem:[#allocation7 + $0x40] sm:$0xff]
        %v320 = vld [vmem:[#allocation7 + $0x48] sm:$0xff]
        %v321 = vld [vmem:[#allocation7 + $0x50] sm:$0xff]
        %v322 = vld [vmem:[#allocation7 + $0x58] sm:$0xff]
        %v323 = vld [vmem:[#allocation7 + $0x60] sm:$0xff]
        %v324 = vld [vmem:[#allocation7 + $0x68] sm:$0xff]
        %v325 = vld [vmem:[#allocation7 + $0x70] sm:$0xff]
        %v326 = vld [vmem:[#allocation7 + $0x78] sm:$0xff]
        %v327 = vld [vmem:[#allocation7 + $0x80] sm:$0xff]
        %v328 = vld [vmem:[#allocation7 + $0x88] sm:$0xff]
        %v329 = vld [vmem:[#allocation7 + $0x90] sm:$0xff]
        %v330 = vld [vmem:[#allocation7 + $0x98] sm:$0xff]
        %v331 = vld [vmem:[#allocation7 + $0xa0] sm:$0xff]
        %v332 = vld [vmem:[#allocation7 + $0xa8] sm:$0xff]
        %v333 = vld [vmem:[#allocation7 + $0xb0] sm:$0xff]
        %v334 = vld [vmem:[#allocation7 + $0xb8] sm:$0xff]
        %v335 = vld [vmem:[#allocation7 + $0xc0] sm:$0xff]
        %v336 = vld [vmem:[#allocation7 + $0xc8] sm:$0xff]
        %v337 = vld [vmem:[#allocation7 + $0xd0] sm:$0xff]
        %v338 = vld [vmem:[#allocation7 + $0xd8] sm:$0xff]
        %v339 = vld [vmem:[#allocation7 + $0xe0] sm:$0xff]
        %v340 = vld [vmem:[#allocation7 + $0xe8] sm:$0xff]
        %v341 = vld [vmem:[#allocation7 + $0xf0] sm:$0xff]
        %v342 = vld [vmem:[#allocation7 + $0xf8] sm:$0xff]
        %v343 = vld [vmem:[%s4] sm:$0x3]
        %v345 = vperm.slane %v343, 0
        %v346 = vperm.slane %v343, 1
        %349 = vmatpush.msra.mxu0 %v341
        %350 = vmatpush.msra.mxu0 %v339
        %351 = vmatpush.msra.mxu0 %v337
        %352 = vmatpush.msra.mxu0 %v335
        %353 = vmatpush.msra.mxu0 %v333
        %354 = vmatpush.msra.mxu0 %v331
        %355 = vmatpush.msra.mxu0 %v329
        %356 = vmatpush.msra.mxu0 %v327
        %357 = vmatpush.msra.mxu0 %v325
        %358 = vmatpush.msra.mxu0 %v323
        %359 = vmatpush.msra.mxu0 %v321
        %360 = vmatpush.msra.mxu0 %v319
        %361 = vmatpush.msra.mxu0 %v317
        %362 = vmatpush.msra.mxu0 %v315
        %363 = vmatpush.msra.mxu0 %v313
        %364 = vmatpush.msra.mxu0 %v311
        %365 = vmatmul.f32.gmra.mxu0 %v310
        %v366 = vpop.f32.mrf.mxu0
        %v367 = vadd.f32 %v345, %v366
        %368 = vdwg.mxu0
        %369 = vmatpush.msra.mxu0 %v342
        %370 = vmatpush.msra.mxu0 %v340
        %371 = vmatpush.msra.mxu0 %v338
        %372 = vmatpush.msra.mxu0 %v336
        %373 = vmatpush.msra.mxu0 %v334
        %374 = vmatpush.msra.mxu0 %v332
        %375 = vmatpush.msra.mxu0 %v330
        %376 = vmatpush.msra.mxu0 %v328
        %377 = vmatpush.msra.mxu0 %v326
        %378 = vmatpush.msra.mxu0 %v324
        %379 = vmatpush.msra.mxu0 %v322
        %380 = vmatpush.msra.mxu0 %v320
        %381 = vmatpush.msra.mxu0 %v318
        %382 = vmatpush.msra.mxu0 %v316
        %383 = vmatpush.msra.mxu0 %v314
        %384 = vmatpush.msra.mxu0 %v312
        %385 = vmatmul.f32.gmra.mxu0 %v310
        %v386 = vpop.f32.mrf.mxu0
        %v387 = vadd.f32 %v346, %v386
        %388 = vdwg.mxu0
        %389 = vst [vmem:[%s272] sm:$0xff] %v367
        %390 = vst [vmem:[%s272 + $0x8] sm:$0xff] %v387
        %s391 = sand.u32 %s141, 1
        %s392 = scalar_lea.sflag [#allocation4], %s391
        %s393 = sand.u32 %s141, 1
        %s394 = smul.addr %s393, 16
        %s395 = scalar_lea.vmem [#allocation8], %s394
        // Predicated region
        $region53: #{tpu_custom_call.1} parent=39 // pred_check
          %p396 = pneg %p151
        $region54: #{tpu_custom_call.1} parent=39 // pred_check_branch
          %398 = sbr.rel (%p396) target = $region56
        $region55: #{tpu_custom_call.1} parent=39 // pred_region
          %400 = vsyncadd %s392, 0
          %s401 = smul.addr %s23, 2
          %s402 = smul.addr %s401, 8
          %s403 = scalar_lea.hbm %s5, %s402
          %s405 = sshll.u32 %s395, 4
          %s406 = int_to_ptr.vmem [resolvable:$true] %s405
          %s407 = sshll.u32 %s403, 4
          %s408 = int_to_ptr.hbm [resolvable:$true] %s407
          %410 = dma.vmem_to_hbm [thread:$0]  %s406, 256, %s408, %s392
        $region56: #{tpu_custom_call.1} parent=39 // pred_fallthru
          _
      $region40: #{tpu_custom_call.1} parent=5 // pred_fallthru
        _
      %p411 = scmp.le.s32.totalorder 2, %s18
      // Predicated region
      $region57: #{tpu_custom_call.1} parent=5 // pred_check
        %p412 = pneg %p411
      $region58: #{tpu_custom_call.1} parent=5 // pred_check_branch
        %414 = sbr.rel (%p412) target = $region60
      $region59: #{tpu_custom_call.1} parent=5 // pred_region
        %s415 = ssub.s32 %s18, 2
        // Predicated region
        $region61: #{tpu_custom_call.1} parent=59 // pred_check
          %p416 = pneg %p157
        $region62: #{tpu_custom_call.1} parent=59 // pred_check_branch
          %418 = sbr.rel (%p416) target = $region64
        $region63: #{tpu_custom_call.1} parent=59 // pred_region
          %s419 = sand.u32 %s142, 1
          %s420 = scalar_lea.sflag [#allocation4], %s419
          %s421 = sand.u32 %s142, 1
          %s422 = smul.addr %s421, 16
          %s423 = scalar_lea.vmem [#allocation8], %s422
          %425 = dma.done %s420, 256
        $region64: #{tpu_custom_call.1} parent=59 // pred_fallthru
          _
      $region60: #{tpu_custom_call.1} parent=5 // pred_fallthru
        _
    $region6: #{tpu_custom_call.1} parent=1 // loop_footer
      %s22 = sadd.s32 1, %s18
    $region7: #{tpu_custom_call.1} parent=1 // loop_footer_branch
      %17 = sbr.rel target = $region3
    $region8: #{tpu_custom_call.1} parent=1 // loop_exit
      _
    %426 = vsyncpa [#allocation3], 1
    %s427 = scalar_lea.sflag [#allocation3], 1
    %428 = vsyncpa %s427, 1
    %429 = vsyncpa [#allocation6], 1
    %430 = vsyncpa [#allocation4], 1
    %s431 = scalar_lea.sflag [#allocation4], 1
    %432 = vsyncpa %s431, 1

</llo_original>
